<compile_context>
chip_gen: v5e
topology: v5e:2x2
jax: 0.10.0
libtpu: 0.0.40
codegen_flags: <defaults>
</compile_context>

<pallas_src>
import functools

import jax
import jax.numpy as jnp
from jax import lax
from jax.experimental import pallas as pl
from jax.experimental.pallas import tpu as pltpu

_PAD = 8  # zero rows above/below the image inside the scratch (keeps stores 8-aligned)


def _basic_block_kernel(x_ref, s1_ref, b1_ref, w1_ref, s2_ref, b2_ref,
                        w2_ref, o_ref, pad1_ref, pad2_ref,
                        *, nb, H, Wcin, Wcout, use_conv1x1):
    # Slab layout (channels packed into the lane axis):
    #   x_ref   : (nb, H, Wcin)  f32        Wcin  = W * Cin
    #   w1_ref  : (3, Wcin, ncols1) bf16    ncols1 = Wcout (+Wcout if fused shortcut)
    #   w2_ref  : (3, Wcout, Wcout) bf16
    #   o_ref   : (nb, H, Wcout) f32        Wcout = W * Cout  (lane-dense store)
    #   pad*_ref: (nb, H + 2*_PAD, Wc) f32  scratch with zero border rows
    M = nb * H

    # Border rows only (cheap), every step -> correct even when the batch axis
    # is split across TensorCores and this core never sees program_id == 0.
    # The interior stores below never touch these rows.
    pad1_ref[:, pl.ds(0, _PAD), :] = jnp.zeros((nb, _PAD, Wcin), jnp.float32)
    pad1_ref[:, pl.ds(_PAD + H, _PAD), :] = jnp.zeros((nb, _PAD, Wcin), jnp.float32)
    pad2_ref[:, pl.ds(0, _PAD), :] = jnp.zeros((nb, _PAD, Wcout), jnp.float32)
    pad2_ref[:, pl.ds(_PAD + H, _PAD), :] = jnp.zeros((nb, _PAD, Wcout), jnp.float32)

    # ---- BN1 + ReLU (f32 elementwise) --------------------------------------
    x = x_ref[...].astype(jnp.float32)                            # (nb, H, Wcin)
    act1 = jnp.maximum(x * s1_ref[...][None] + b1_ref[...][None], 0.0)

    # ---- conv1 (+ fused 1x1 shortcut columns) ------------------------------
    # One sublane-aligned interior store, then 3 banded-weight MXU dots.
    pad1_ref[:, pl.ds(_PAD, H), :] = act1
    r1 = None
    for kh in range(3):
        piece = pad1_ref[:, pl.ds(_PAD - 1 + kh, H), :].reshape(M, Wcin)
        d = jnp.dot(piece.astype(jnp.bfloat16), w1_ref[kh],
                    preferred_element_type=jnp.float32)
        r1 = d if r1 is None else r1 + d

    y1 = r1[:, :Wcout]                                            # conv1 output
    if use_conv1x1:
        shortcut = r1[:, Wcout:]                                  # fused act1 @ Wsc
    else:
        shortcut = x.reshape(M, Wcin)                             # identity: pre-BN x

    # ---- BN2 + ReLU (+ dropout == identity in eval mode) -------------------
    act2 = jnp.maximum(y1 * s2_ref[...] + b2_ref[...], 0.0)       # (M, Wcout)
    # TODO(synk): training-mode dropout mask not implemented (eval semantics).

    # ---- conv2, accumulated on top of the shortcut -------------------------
    pad2_ref[:, pl.ds(_PAD, H), :] = act2.reshape(nb, H, Wcout)
    y2 = shortcut
    for kh in range(3):
        piece = pad2_ref[:, pl.ds(_PAD - 1 + kh, H), :].reshape(M, Wcout)
        y2 = y2 + jnp.dot(piece.astype(jnp.bfloat16), w2_ref[kh],
                          preferred_element_type=jnp.float32)

    # Lane-dense (W*Cout wide) unmasked store.
    o_ref[...] = y2.reshape(nb, H, Wcout).astype(o_ref.dtype)


def _banded_conv_weight(k_hwio, W):
    """(3,3,Cin,Cout) HWIO 3x3 kernel -> (3, W*Cin, W*Cout) banded slab weight.

    Row block kh maps the kh-shifted activation slab row to all W output
    positions; the kw shift and the W-edge zero padding are folded into the
    band structure (rows for out-of-range w simply have no entries).
    """
    Cin, Cout = k_hwio.shape[2], k_hwio.shape[3]
    kw = jnp.arange(3)[:, None, None]
    wi = jnp.arange(W)[None, :, None]
    vi = jnp.arange(W)[None, None, :]
    sel = (wi - vi + 1 == kw).astype(k_hwio.dtype)                # (3, W, W)
    b = jnp.einsum('kyio,ywv->kwivo', k_hwio, sel)                # (3, W, Cin, W, Cout)
    return b.reshape(3, W * Cin, W * Cout)


def _diag_1x1_weight(wsc_io, W):
    """(Cin,Cout) 1x1 kernel -> (W*Cin, W*Cout) block-diagonal slab weight."""
    eye = jnp.eye(W, dtype=wsc_io.dtype)
    b = jnp.einsum('io,wv->wivo', wsc_io, eye)
    return b.reshape(W * wsc_io.shape[0], W * wsc_io.shape[1])


def basic_block_forward(x_nchw, params, *, use_conv1x1, batch_block=None):
    """x_nchw: (N, Cin, H, W) float32.  Returns (N, Cout, H, W) float32."""
    N, Cin, H, W = x_nchw.shape
    Cout = params["w2_hwio"].shape[-1]
    Wcin, Wcout = W * Cin, W * Cout

    # Fold BatchNorm (eval mode) into per-channel scale/bias, tiled to slab lanes.
    eps = 1e-5
    s1 = params["gamma1"] / jnp.sqrt(params["var1"] + eps)
    b1 = params["beta1"] - params["mean1"] * s1
    s2 = params["gamma2"] / jnp.sqrt(params["var2"] + eps)
    b2 = params["beta2"] - params["mean2"] * s2
    s1_slab = jnp.tile(s1, W)[None, :].astype(jnp.float32)        # (1, Wcin)
    b1_slab = jnp.tile(b1, W)[None, :].astype(jnp.float32)
    s2_slab = jnp.tile(s2, W)[None, :].astype(jnp.float32)        # (1, Wcout)
    b2_slab = jnp.tile(b2, W)[None, :].astype(jnp.float32)

    # NCHW -> NHWC -> (N, H, W*Cin) slabs (channels packed onto the lane axis).
    x_slab = jnp.transpose(x_nchw, (0, 2, 3, 1)).reshape(N, H, Wcin).astype(jnp.float32)

    # Banded slab weights, bf16 for the MXU (accumulation stays f32).
    w1 = _banded_conv_weight(params["w1_hwio"].astype(jnp.float32), W)
    if use_conv1x1:
        sc = _diag_1x1_weight(params["wsc_io"].astype(jnp.float32), W)
        extra = jnp.stack([jnp.zeros_like(sc), sc, jnp.zeros_like(sc)], axis=0)
        w1 = jnp.concatenate([w1, extra], axis=-1)                # (3, Wcin, 2*Wcout)
    w2 = _banded_conv_weight(params["w2_hwio"].astype(jnp.float32), W)
    w1 = w1.astype(jnp.bfloat16)
    w2 = w2.astype(jnp.bfloat16)
    ncols1 = w1.shape[-1]

    # Several images per grid step (flattened into matmul M).  For v7x one can
    # instead lower batch_block to expose >=2 grid steps to the two TensorCores.
    if batch_block is None:
        batch_block = min(N, 8)
        while N % batch_block:
            batch_block -= 1
    nb = batch_block
    assert N % nb == 0

    kernel = functools.partial(_basic_block_kernel, nb=nb, H=H, Wcin=Wcin,
                               Wcout=Wcout, use_conv1x1=use_conv1x1)

    const2 = lambda i: (0, 0)
    const3 = lambda i: (0, 0, 0)
    out = pl.pallas_call(
        kernel,
        out_shape=jax.ShapeDtypeStruct((N, H, Wcout), jnp.float32),
        grid_spec=pltpu.PrefetchScalarGridSpec(
            num_scalar_prefetch=0,
            grid=(N // nb,),
            in_specs=[
                pl.BlockSpec((nb, H, Wcin), lambda i: (i, 0, 0)),   # x slabs
                pl.BlockSpec((1, Wcin), const2),                    # BN1 scale
                pl.BlockSpec((1, Wcin), const2),                    # BN1 bias
                pl.BlockSpec((3, Wcin, ncols1), const3),            # conv1 (+shortcut) weights
                pl.BlockSpec((1, Wcout), const2),                   # BN2 scale
                pl.BlockSpec((1, Wcout), const2),                   # BN2 bias
                pl.BlockSpec((3, Wcout, Wcout), const3),            # conv2 weights
            ],
            out_specs=pl.BlockSpec((nb, H, Wcout), lambda i: (i, 0, 0)),
            scratch_shapes=[
                pltpu.VMEM((nb, H + 2 * _PAD, Wcin), jnp.float32),
                pltpu.VMEM((nb, H + 2 * _PAD, Wcout), jnp.float32),
            ],
        ),
        compiler_params=pltpu.CompilerParams(
            dimension_semantics=("parallel",),          # batch axis -> 2 TCs on v7x
            vmem_limit_bytes=32 * 1024 * 1024,
        ),
    )(x_slab, s1_slab, b1_slab, w1, s2_slab, b2_slab, w2)

    return jnp.transpose(out.reshape(N, H, W, Cout), (0, 3, 1, 2))


def _reference_forward(x, params, *, use_conv1x1):
    """Pure-JAX NCHW reference mirroring the PyTorch forward (eval mode)."""
    eps = 1e-5

    def bn(v, g, b, m, var):
        return (v - m[None, :, None, None]) / jnp.sqrt(var + eps)[None, :, None, None] \
               * g[None, :, None, None] + b[None, :, None, None]

    def conv(v, w_oihw, pad):
        return lax.conv_general_dilated(v, w_oihw, window_strides=(1, 1),
                                        padding=[(pad, pad), (pad, pad)],
                                        dimension_numbers=("NCHW", "OIHW", "NCHW"))

    out = jax.nn.relu(bn(x, params["gamma1"], params["beta1"],
                         params["mean1"], params["var1"]))
    if use_conv1x1:
        wsc_oihw = jnp.transpose(params["wsc_io"], (1, 0))[:, :, None, None]
        shortcut = conv(out, wsc_oihw, 0)
    else:
        shortcut = x
    w1_oihw = jnp.transpose(params["w1_hwio"], (3, 2, 0, 1))
    w2_oihw = jnp.transpose(params["w2_hwio"], (3, 2, 0, 1))
    out = conv(out, w1_oihw, 1)
    out = jax.nn.relu(bn(out, params["gamma2"], params["beta2"],
                         params["mean2"], params["var2"]))
    out = conv(out, w2_oihw, 1)
    return out + shortcut


def _make_params(key, cin, cout, w_scale=0.1):
    ks = jax.random.split(key, 11)
    params = {
        "gamma1": 1.0 + 0.1 * jax.random.normal(ks[0], (cin,), jnp.float32),
        "beta1": 0.1 * jax.random.normal(ks[1], (cin,), jnp.float32),
        "mean1": 0.05 * jax.random.normal(ks[2], (cin,), jnp.float32),
        "var1": 1.0 + 0.1 * jax.random.uniform(ks[3], (cin,), jnp.float32),
        "gamma2": 1.0 + 0.1 * jax.random.normal(ks[4], (cout,), jnp.float32),
        "beta2": 0.1 * jax.random.normal(ks[5], (cout,), jnp.float32),
        "mean2": 0.05 * jax.random.normal(ks[6], (cout,), jnp.float32),
        "var2": 1.0 + 0.1 * jax.random.uniform(ks[7], (cout,), jnp.float32),
        # conv weights stored HWIO (conv1: 3x3xCinxCout, conv2: 3x3xCoutxCout)
        "w1_hwio": w_scale * jax.random.normal(ks[8], (3, 3, cin, cout), jnp.float32),
        "w2_hwio": w_scale * jax.random.normal(ks[9], (3, 3, cout, cout), jnp.float32),
    }
    if cin != cout:
        params["wsc_io"] = w_scale * jax.random.normal(ks[10], (cin, cout), jnp.float32)
    return params


if __name__ == "__main__":
    key = jax.random.PRNGKey(0)
    kp1, kp2, kx1, kx2 = jax.random.split(key, 4)

    # Tolerance is set for bf16 MXU inputs with f32 accumulation (typical max
    # abs error ~1e-2 at these magnitudes; the math is otherwise exact).
    TOL = 1e-1

    # Config 1: inplanes=4, planes=8, stride=1 -> conv1x1 shortcut (fused into conv1).
    N, Cin, Cout, H, W = 2, 4, 8, 16, 16
    params1 = _make_params(kp1, Cin, Cout)
    x1 = jax.random.normal(kx1, (N, Cin, H, W), jnp.float32)
    out1 = jax.block_until_ready(basic_block_forward(x1, params1, use_conv1x1=True))
    ref1 = _reference_forward(x1, params1, use_conv1x1=True)
    assert out1.shape == (N, Cout, H, W)
    err1 = float(jnp.max(jnp.abs(out1 - ref1)))
    assert err1 < TOL, f"mismatch vs JAX reference (conv1x1 shortcut): {err1}"

    # Config 2: inplanes=planes=8, stride=1 -> identity shortcut (wsc never passed).
    C = 8
    params2 = _make_params(kp2, C, C)
    x2 = jax.random.normal(kx2, (N, C, H, W), jnp.float32)
    out2 = jax.block_until_ready(basic_block_forward(x2, params2, use_conv1x1=False))
    ref2 = _reference_forward(x2, params2, use_conv1x1=False)
    assert out2.shape == (N, C, H, W)
    err2 = float(jnp.max(jnp.abs(out2 - ref2)))
    assert err2 < TOL, f"mismatch vs JAX reference (identity shortcut): {err2}"

    print("KERNEL_OK")
</pallas_src>

<mosaic_0001>
module attributes {stable_mosaic.version = 11 : i64} {
  func.func @_basic_block_kernel(%arg0: i32, %arg1: memref<2x16x64xf32, #tpu.memory_space<vmem>>, %arg2: memref<1x64xf32, #tpu.memory_space<vmem>>, %arg3: memref<1x64xf32, #tpu.memory_space<vmem>>, %arg4: memref<3x64x256xbf16, #tpu.memory_space<vmem>>, %arg5: memref<1x128xf32, #tpu.memory_space<vmem>>, %arg6: memref<1x128xf32, #tpu.memory_space<vmem>>, %arg7: memref<3x128x128xbf16, #tpu.memory_space<vmem>>, %arg8: memref<2x16x128xf32, #tpu.memory_space<vmem>>, %arg9: memref<2x32x64xf32, #tpu.memory_space<vmem>>, %arg10: memref<2x32x128xf32, #tpu.memory_space<vmem>>) attributes {dimension_semantics = [#tpu.dimension_semantics<parallel>], iteration_bounds = array<i64: 1>, scalar_prefetch = 0 : i64, scratch_operands = 2 : i64, tpu.core_type = #tpu.core_type<tc>, window_params = [{transform_indices = @transform_0, window_bounds = array<i64: 2, 16, 64>}, {pipeline_mode = #tpu.pipeline_mode<synchronous>, transform_indices = @transform_1, window_bounds = array<i64: 1, 64>}, {pipeline_mode = #tpu.pipeline_mode<synchronous>, transform_indices = @transform_2, window_bounds = array<i64: 1, 64>}, {pipeline_mode = #tpu.pipeline_mode<synchronous>, transform_indices = @transform_3, window_bounds = array<i64: 3, 64, 256>}, {pipeline_mode = #tpu.pipeline_mode<synchronous>, transform_indices = @transform_4, window_bounds = array<i64: 1, 128>}, {pipeline_mode = #tpu.pipeline_mode<synchronous>, transform_indices = @transform_5, window_bounds = array<i64: 1, 128>}, {pipeline_mode = #tpu.pipeline_mode<synchronous>, transform_indices = @transform_6, window_bounds = array<i64: 3, 128, 128>}, {transform_indices = @transform_7, window_bounds = array<i64: 2, 16, 128>}]} {
    %cst = arith.constant 0.000000e+00 : f32
    %0 = vector.broadcast %cst : f32 to vector<2x8x64xf32>
    %c0 = arith.constant 0 : index
    %c0_0 = arith.constant 0 : index
    %c0_1 = arith.constant 0 : index
    %1 = vector.load %arg9[%c0, %c0_0, %c0_1] : memref<2x32x64xf32, #tpu.memory_space<vmem>>, vector<2x8x64xf32>
    tpu.vector_store %arg9[%c0, %c0_0, %c0_1], %0 {strides = array<i32>} : memref<2x32x64xf32, #tpu.memory_space<vmem>>, vector<2x8x64xf32>,
    %cst_2 = arith.constant 0.000000e+00 : f32
    %2 = vector.broadcast %cst_2 : f32 to vector<2x8x64xf32>
    %c0_3 = arith.constant 0 : index
    %c24 = arith.constant 24 : index
    %c0_4 = arith.constant 0 : index
    %3 = vector.load %arg9[%c0_3, %c24, %c0_4] : memref<2x32x64xf32, #tpu.memory_space<vmem>>, vector<2x8x64xf32>
    tpu.vector_store %arg9[%c0_3, %c24, %c0_4], %2 {strides = array<i32>} : memref<2x32x64xf32, #tpu.memory_space<vmem>>, vector<2x8x64xf32>,
    %cst_5 = arith.constant 0.000000e+00 : f32
    %4 = vector.broadcast %cst_5 : f32 to vector<2x8x128xf32>
    %c0_6 = arith.constant 0 : index
    %c0_7 = arith.constant 0 : index
    %c0_8 = arith.constant 0 : index
    %5 = vector.load %arg10[%c0_6, %c0_7, %c0_8] : memref<2x32x128xf32, #tpu.memory_space<vmem>>, vector<2x8x128xf32>
    tpu.vector_store %arg10[%c0_6, %c0_7, %c0_8], %4 {strides = array<i32>} : memref<2x32x128xf32, #tpu.memory_space<vmem>>, vector<2x8x128xf32>,
    %cst_9 = arith.constant 0.000000e+00 : f32
    %6 = vector.broadcast %cst_9 : f32 to vector<2x8x128xf32>
    %c0_10 = arith.constant 0 : index
    %c24_11 = arith.constant 24 : index
    %c0_12 = arith.constant 0 : index
    %7 = vector.load %arg10[%c0_10, %c24_11, %c0_12] : memref<2x32x128xf32, #tpu.memory_space<vmem>>, vector<2x8x128xf32>
    tpu.vector_store %arg10[%c0_10, %c24_11, %c0_12], %6 {strides = array<i32>} : memref<2x32x128xf32, #tpu.memory_space<vmem>>, vector<2x8x128xf32>,
    %c0_13 = arith.constant 0 : index
    %c0_14 = arith.constant 0 : index
    %c0_15 = arith.constant 0 : index
    %8 = vector.load %arg1[%c0_13, %c0_14, %c0_15] : memref<2x16x64xf32, #tpu.memory_space<vmem>>, vector<2x16x64xf32>
    %c0_16 = arith.constant 0 : index
    %c0_17 = arith.constant 0 : index
    %9 = vector.load %arg2[%c0_16, %c0_17] : memref<1x64xf32, #tpu.memory_space<vmem>>, vector<1x64xf32>
    %10 = vector.shape_cast %9 : vector<1x64xf32> to vector<1x1x64xf32>
    %11 = vector.broadcast %10 : vector<1x1x64xf32> to vector<2x16x64xf32>
    %12 = arith.mulf %8, %11 : vector<2x16x64xf32>
    %c0_18 = arith.constant 0 : index
    %c0_19 = arith.constant 0 : index
    %13 = vector.load %arg3[%c0_18, %c0_19] : memref<1x64xf32, #tpu.memory_space<vmem>>, vector<1x64xf32>
    %14 = vector.shape_cast %13 : vector<1x64xf32> to vector<1x1x64xf32>
    %15 = vector.broadcast %14 : vector<1x1x64xf32> to vector<2x16x64xf32>
    %16 = arith.addf %12, %15 : vector<2x16x64xf32>
    %cst_20 = arith.constant 0.000000e+00 : f32
    %17 = vector.broadcast %cst_20 : f32 to vector<2x16x64xf32>
    %18 = arith.maximumf %16, %17 : vector<2x16x64xf32>
    %c0_21 = arith.constant 0 : index
    %c8 = arith.constant 8 : index
    %c0_22 = arith.constant 0 : index
    %19 = vector.load %arg9[%c0_21, %c8, %c0_22] : memref<2x32x64xf32, #tpu.memory_space<vmem>>, vector<2x16x64xf32>
    tpu.vector_store %arg9[%c0_21, %c8, %c0_22], %18 {strides = array<i32>} : memref<2x32x64xf32, #tpu.memory_space<vmem>>, vector<2x16x64xf32>,
    %c0_23 = arith.constant 0 : index
    %c7 = arith.constant 7 : index
    %c0_24 = arith.constant 0 : index
    %20 = vector.load %arg9[%c0_23, %c7, %c0_24] : memref<2x32x64xf32, #tpu.memory_space<vmem>>, vector<2x16x64xf32>
    %21 = vector.shape_cast %20 : vector<2x16x64xf32> to vector<32x64xf32>
    %22 = arith.truncf %21 : vector<32x64xf32> to vector<32x64xbf16>
    %c0_25 = arith.constant 0 : index
    %c0_26 = arith.constant 0 : index
    %c0_27 = arith.constant 0 : index
    %23 = vector.load %arg4[%c0_25, %c0_26, %c0_27] : memref<3x64x256xbf16, #tpu.memory_space<vmem>>, vector<1x64x256xbf16>
    %24 = vector.shape_cast %23 : vector<1x64x256xbf16> to vector<64x256xbf16>
    %cst_28 = arith.constant dense<0.000000e+00> : vector<32x256xf32>
    %25 = tpu.matmul %22, %24, %cst_28 {dimension_numbers = #tpu.dot_dimension_numbers<[1], [0], [0], [1], [0, 0, 1, 1], [], []>} : vector<32x64xbf16>, vector<64x256xbf16>, vector<32x256xf32> -> vector<32x256xf32>
    %c0_29 = arith.constant 0 : index
    %c8_30 = arith.constant 8 : index
    %c0_31 = arith.constant 0 : index
    %26 = vector.load %arg9[%c0_29, %c8_30, %c0_31] : memref<2x32x64xf32, #tpu.memory_space<vmem>>, vector<2x16x64xf32>
    %27 = vector.shape_cast %26 : vector<2x16x64xf32> to vector<32x64xf32>
    %28 = arith.truncf %27 : vector<32x64xf32> to vector<32x64xbf16>
    %c1 = arith.constant 1 : index
    %c0_32 = arith.constant 0 : index
    %c0_33 = arith.constant 0 : index
    %29 = vector.load %arg4[%c1, %c0_32, %c0_33] : memref<3x64x256xbf16, #tpu.memory_space<vmem>>, vector<1x64x256xbf16>
    %30 = vector.shape_cast %29 : vector<1x64x256xbf16> to vector<64x256xbf16>
    %cst_34 = arith.constant dense<0.000000e+00> : vector<32x256xf32>
    %31 = tpu.matmul %28, %30, %cst_34 {dimension_numbers = #tpu.dot_dimension_numbers<[1], [0], [0], [1], [0, 0, 1, 1], [], []>} : vector<32x64xbf16>, vector<64x256xbf16>, vector<32x256xf32> -> vector<32x256xf32>
    %32 = arith.addf %25, %31 : vector<32x256xf32>
    %c0_35 = arith.constant 0 : index
    %c9 = arith.constant 9 : index
    %c0_36 = arith.constant 0 : index
    %33 = vector.load %arg9[%c0_35, %c9, %c0_36] : memref<2x32x64xf32, #tpu.memory_space<vmem>>, vector<2x16x64xf32>
    %34 = vector.shape_cast %33 : vector<2x16x64xf32> to vector<32x64xf32>
    %35 = arith.truncf %34 : vector<32x64xf32> to vector<32x64xbf16>
    %c2 = arith.constant 2 : index
    %c0_37 = arith.constant 0 : index
    %c0_38 = arith.constant 0 : index
    %36 = vector.load %arg4[%c2, %c0_37, %c0_38] : memref<3x64x256xbf16, #tpu.memory_space<vmem>>, vector<1x64x256xbf16>
    %37 = vector.shape_cast %36 : vector<1x64x256xbf16> to vector<64x256xbf16>
    %cst_39 = arith.constant dense<0.000000e+00> : vector<32x256xf32>
    %38 = tpu.matmul %35, %37, %cst_39 {dimension_numbers = #tpu.dot_dimension_numbers<[1], [0], [0], [1], [0, 0, 1, 1], [], []>} : vector<32x64xbf16>, vector<64x256xbf16>, vector<32x256xf32> -> vector<32x256xf32>
    %39 = arith.addf %32, %38 : vector<32x256xf32>
    %40 = vector.extract_strided_slice %39 {offsets = [0, 0], sizes = [32, 128], strides = [1, 1]} : vector<32x256xf32> to vector<32x128xf32>
    %41 = vector.extract_strided_slice %39 {offsets = [0, 128], sizes = [32, 128], strides = [1, 1]} : vector<32x256xf32> to vector<32x128xf32>
    %c0_40 = arith.constant 0 : index
    %c0_41 = arith.constant 0 : index
    %42 = vector.load %arg5[%c0_40, %c0_41] : memref<1x128xf32, #tpu.memory_space<vmem>>, vector<1x128xf32>
    %43 = vector.broadcast %42 : vector<1x128xf32> to vector<32x128xf32>
    %44 = arith.mulf %40, %43 : vector<32x128xf32>
    %c0_42 = arith.constant 0 : index
    %c0_43 = arith.constant 0 : index
    %45 = vector.load %arg6[%c0_42, %c0_43] : memref<1x128xf32, #tpu.memory_space<vmem>>, vector<1x128xf32>
    %46 = vector.broadcast %45 : vector<1x128xf32> to vector<32x128xf32>
    %47 = arith.addf %44, %46 : vector<32x128xf32>
    %cst_44 = arith.constant 0.000000e+00 : f32
    %48 = vector.broadcast %cst_44 : f32 to vector<32x128xf32>
    %49 = arith.maximumf %47, %48 : vector<32x128xf32>
    %50 = vector.shape_cast %49 : vector<32x128xf32> to vector<2x16x128xf32>
    %c0_45 = arith.constant 0 : index
    %c8_46 = arith.constant 8 : index
    %c0_47 = arith.constant 0 : index
    %51 = vector.load %arg10[%c0_45, %c8_46, %c0_47] : memref<2x32x128xf32, #tpu.memory_space<vmem>>, vector<2x16x128xf32>
    tpu.vector_store %arg10[%c0_45, %c8_46, %c0_47], %50 {strides = array<i32>} : memref<2x32x128xf32, #tpu.memory_space<vmem>>, vector<2x16x128xf32>,
    %c0_48 = arith.constant 0 : index
    %c7_49 = arith.constant 7 : index
    %c0_50 = arith.constant 0 : index
    %52 = vector.load %arg10[%c0_48, %c7_49, %c0_50] : memref<2x32x128xf32, #tpu.memory_space<vmem>>, vector<2x16x128xf32>
    %53 = vector.shape_cast %52 : vector<2x16x128xf32> to vector<32x128xf32>
    %54 = arith.truncf %53 : vector<32x128xf32> to vector<32x128xbf16>
    %c0_51 = arith.constant 0 : index
    %c0_52 = arith.constant 0 : index
    %c0_53 = arith.constant 0 : index
    %55 = vector.load %arg7[%c0_51, %c0_52, %c0_53] : memref<3x128x128xbf16, #tpu.memory_space<vmem>>, vector<1x128x128xbf16>
    %56 = vector.shape_cast %55 : vector<1x128x128xbf16> to vector<128x128xbf16>
    %cst_54 = arith.constant dense<0.000000e+00> : vector<32x128xf32>
    %57 = tpu.matmul %54, %56, %cst_54 {dimension_numbers = #tpu.dot_dimension_numbers<[1], [0], [0], [1], [0, 0, 1, 1], [], []>} : vector<32x128xbf16>, vector<128x128xbf16>, vector<32x128xf32> -> vector<32x128xf32>
    %58 = arith.addf %41, %57 : vector<32x128xf32>
    %c0_55 = arith.constant 0 : index
    %c8_56 = arith.constant 8 : index
    %c0_57 = arith.constant 0 : index
    %59 = vector.load %arg10[%c0_55, %c8_56, %c0_57] : memref<2x32x128xf32, #tpu.memory_space<vmem>>, vector<2x16x128xf32>
    %60 = vector.shape_cast %59 : vector<2x16x128xf32> to vector<32x128xf32>
    %61 = arith.truncf %60 : vector<32x128xf32> to vector<32x128xbf16>
    %c1_58 = arith.constant 1 : index
    %c0_59 = arith.constant 0 : index
    %c0_60 = arith.constant 0 : index
    %62 = vector.load %arg7[%c1_58, %c0_59, %c0_60] : memref<3x128x128xbf16, #tpu.memory_space<vmem>>, vector<1x128x128xbf16>
    %63 = vector.shape_cast %62 : vector<1x128x128xbf16> to vector<128x128xbf16>
    %cst_61 = arith.constant dense<0.000000e+00> : vector<32x128xf32>
    %64 = tpu.matmul %61, %63, %cst_61 {dimension_numbers = #tpu.dot_dimension_numbers<[1], [0], [0], [1], [0, 0, 1, 1], [], []>} : vector<32x128xbf16>, vector<128x128xbf16>, vector<32x128xf32> -> vector<32x128xf32>
    %65 = arith.addf %58, %64 : vector<32x128xf32>
    %c0_62 = arith.constant 0 : index
    %c9_63 = arith.constant 9 : index
    %c0_64 = arith.constant 0 : index
    %66 = vector.load %arg10[%c0_62, %c9_63, %c0_64] : memref<2x32x128xf32, #tpu.memory_space<vmem>>, vector<2x16x128xf32>
    %67 = vector.shape_cast %66 : vector<2x16x128xf32> to vector<32x128xf32>
    %68 = arith.truncf %67 : vector<32x128xf32> to vector<32x128xbf16>
    %c2_65 = arith.constant 2 : index
    %c0_66 = arith.constant 0 : index
    %c0_67 = arith.constant 0 : index
    %69 = vector.load %arg7[%c2_65, %c0_66, %c0_67] : memref<3x128x128xbf16, #tpu.memory_space<vmem>>, vector<1x128x128xbf16>
    %70 = vector.shape_cast %69 : vector<1x128x128xbf16> to vector<128x128xbf16>
    %cst_68 = arith.constant dense<0.000000e+00> : vector<32x128xf32>
    %71 = tpu.matmul %68, %70, %cst_68 {dimension_numbers = #tpu.dot_dimension_numbers<[1], [0], [0], [1], [0, 0, 1, 1], [], []>} : vector<32x128xbf16>, vector<128x128xbf16>, vector<32x128xf32> -> vector<32x128xf32>
    %72 = arith.addf %65, %71 : vector<32x128xf32>
    %73 = vector.shape_cast %72 : vector<32x128xf32> to vector<2x16x128xf32>
    %c0_69 = arith.constant 0 : index
    %c0_70 = arith.constant 0 : index
    %c0_71 = arith.constant 0 : index
    %74 = vector.load %arg8[%c0_69, %c0_70, %c0_71] : memref<2x16x128xf32, #tpu.memory_space<vmem>>, vector<2x16x128xf32>
    tpu.vector_store %arg8[%c0_69, %c0_70, %c0_71], %73 {strides = array<i32>} : memref<2x16x128xf32, #tpu.memory_space<vmem>>, vector<2x16x128xf32>,
    return
  }
  func.func @transform_0(%arg0: i32) -> (i32, i32, i32) {
    %c0_i32 = arith.constant 0 : i32
    %c0_i32_0 = arith.constant 0 : i32
    %c0_i32_1 = arith.constant 0 : i32
    return %arg0, %c0_i32, %c0_i32_0 : i32, i32, i32
  }
  func.func @transform_1(%arg0: i32) -> (i32, i32) {
    %c0_i32 = arith.constant 0 : i32
    %c0_i32_0 = arith.constant 0 : i32
    %c0_i32_1 = arith.constant 0 : i32
    return %c0_i32, %c0_i32_0 : i32, i32
  }
  func.func @transform_2(%arg0: i32) -> (i32, i32) {
    %c0_i32 = arith.constant 0 : i32
    %c0_i32_0 = arith.constant 0 : i32
    %c0_i32_1 = arith.constant 0 : i32
    return %c0_i32, %c0_i32_0 : i32, i32
  }
  func.func @transform_3(%arg0: i32) -> (i32, i32, i32) {
    %c0_i32 = arith.constant 0 : i32
    %c0_i32_0 = arith.constant 0 : i32
    %c0_i32_1 = arith.constant 0 : i32
    %c0_i32_2 = arith.constant 0 : i32
    return %c0_i32, %c0_i32_0, %c0_i32_1 : i32, i32, i32
  }
  func.func @transform_4(%arg0: i32) -> (i32, i32) {
    %c0_i32 = arith.constant 0 : i32
    %c0_i32_0 = arith.constant 0 : i32
    %c0_i32_1 = arith.constant 0 : i32
    return %c0_i32, %c0_i32_0 : i32, i32
  }
  func.func @transform_5(%arg0: i32) -> (i32, i32) {
    %c0_i32 = arith.constant 0 : i32
    %c0_i32_0 = arith.constant 0 : i32
    %c0_i32_1 = arith.constant 0 : i32
    return %c0_i32, %c0_i32_0 : i32, i32
  }
  func.func @transform_6(%arg0: i32) -> (i32, i32, i32) {
    %c0_i32 = arith.constant 0 : i32
    %c0_i32_0 = arith.constant 0 : i32
    %c0_i32_1 = arith.constant 0 : i32
    %c0_i32_2 = arith.constant 0 : i32
    return %c0_i32, %c0_i32_0, %c0_i32_1 : i32, i32, i32
  }
  func.func @transform_7(%arg0: i32) -> (i32, i32, i32) {
    %c0_i32 = arith.constant 0 : i32
    %c0_i32_0 = arith.constant 0 : i32
    %c0_i32_1 = arith.constant 0 : i32
    return %arg0, %c0_i32, %c0_i32_0 : i32, i32, i32
  }
}

</mosaic_0001>

<llo_original>
// kernel: tpu_custom_call.1
$region0: #{tpu_custom_call.1}
  #allocation0 [shape = 'u32[]', space=smem, size = 0x4, offset = 0x4, fixed_abs, tag = 'smem constant byte address 0x4 - core index']
  #allocation1 [shape = 'u32[72,128]{1,0:T(1,128)}', space=vmem, size = 0x9000, scoped, tag = 'internal scratch']
  #allocation2 [shape = 'f32[2,32,64]{2,1,0:T(8,128)}', space=vmem, size = 0x8000, scoped, tag = 'scratch operand']
  #allocation3 [shape = 'f32[2,32,128]{2,1,0:T(8,128)}', space=vmem, size = 0x8000, scoped, tag = 'scratch operand']
  %s0 = inlined_call_operand.hbm [shape: f32[2,16,64], index: 0, kind: input, shape index: {}]
  %s1 = inlined_call_operand.hbm [shape: f32[1,64], index: 1, kind: input, shape index: {}]
  %s2 = inlined_call_operand.vmem [shape: f32[1,64], index: 2, kind: input, shape index: {}]
  %s3 = inlined_call_operand.hbm [shape: bf16[3,64,256], index: 3, kind: input, shape index: {}]
  %s4 = inlined_call_operand.vmem [shape: f32[1,128], index: 4, kind: input, shape index: {}]
  %s5 = inlined_call_operand.vmem [shape: f32[1,128], index: 5, kind: input, shape index: {}]
  %s6 = inlined_call_operand.hbm [shape: bf16[3,128,128], index: 6, kind: input, shape index: {}]
  %s7 = inlined_call_operand.hbm [shape: f32[2,16,128], index: 7, kind: output, shape index: {}]
  %s8 = sld [smem:[#allocation0]]
  $region54: #{tpu_custom_call.1} parent=0
    _
  %s10 = ssub.s32 1, %s8
  %s11 = scalar_select 0, %s10, %s8
  $region1: #{tpu_custom_call.1} parent=0
    #allocation4 [shape = 'u8[16384]{0}', space=vmem, size = 0x4000, scoped, tag = 'input window, operand 0, single buffered']
    #allocation5 [shape = 's32[1]{0}', space=sflag, size = 0x4, scoped, tag = 'scoped memory for tpu_custom_call.1']
    #allocation6 [shape = 's32[1]{0}', space=sflag, size = 0x4, scoped, tag = 'scoped memory for tpu_custom_call.1']
    #allocation7 [shape = 'u8[512]{0}', space=vmem, size = 0x400, scoped, tag = 'input window, operand 1, single buffered']
    #allocation8 [shape = 's32[1]{0}', space=sflag, size = 0x4, scoped, tag = 'scoped memory for tpu_custom_call.1']
    #allocation9 [shape = 'u8[98304]{0}', space=vmem, size = 0x18000, scoped, tag = 'input window, operand 3, single buffered']
    #allocation10 [shape = 'u8[98304]{0}', space=vmem, size = 0x18000, scoped, tag = 'input window, operand 6, single buffered']
    #allocation11 [shape = 's32[1]{0}', space=sflag, size = 0x4, scoped, tag = 'scoped memory for tpu_custom_call.1']
    #allocation12 [shape = 'u8[16384]{0}', space=vmem, size = 0x4000, scoped, tag = 'output window, operand 0, single buffered']
    %12 = vsyncpa [#allocation5], 0
    %13 = vsyncpa [#allocation8], 0
    %14 = vsyncpa [#allocation11], 0
    %15 = vsyncpa [#allocation6], 0
    // Predicated region
    $region2: #{tpu_custom_call.1} parent=1 // pred_check
      _
    $region3: #{tpu_custom_call.1} parent=1 // pred_check_branch
      %17 = sbr.rel (0) target = $region5
    $region4: #{tpu_custom_call.1} parent=1 // pred_region
      %19 = vsyncadd [#allocation5], 0
      %s20 = sshll.u32 %s0, 4
      %s21 = int_to_ptr.hbm [resolvable:$true] %s20
      %s22 = sshll.u32 [#allocation4], 4
      %s23 = int_to_ptr.vmem [resolvable:$true] %s22
      %28 = dma.hbm_to_vmem [thread:$0]  %s21, 512, %s23, [#allocation5], 128, 128, 8
    $region5: #{tpu_custom_call.1} parent=1 // pred_fallthru
      _
    // Predicated region
    $region6: #{tpu_custom_call.1} parent=1 // pred_check
      _
    $region7: #{tpu_custom_call.1} parent=1 // pred_check_branch
      %30 = sbr.rel (0) target = $region9
    $region8: #{tpu_custom_call.1} parent=1 // pred_region
      %32 = vsyncadd [#allocation8], 0
      %s34 = sshll.u32 %s1, 4
      %s35 = int_to_ptr.hbm [resolvable:$true] %s34
      %s36 = sshll.u32 [#allocation7], 4
      %s37 = int_to_ptr.vmem [resolvable:$true] %s36
      %39 = dma.hbm_to_vmem [thread:$0]  %s35, 16, %s37, [#allocation8]
    $region9: #{tpu_custom_call.1} parent=1 // pred_fallthru
      _
    // Predicated region
    $region10: #{tpu_custom_call.1} parent=1 // pred_check
      _
    $region11: #{tpu_custom_call.1} parent=1 // pred_check_branch
      %41 = sbr.rel (0) target = $region13
    $region12: #{tpu_custom_call.1} parent=1 // pred_region
      _
    $region13: #{tpu_custom_call.1} parent=1 // pred_fallthru
      _
    // Predicated region
    $region14: #{tpu_custom_call.1} parent=1 // pred_check
      _
    $region15: #{tpu_custom_call.1} parent=1 // pred_check_branch
      %43 = sbr.rel (0) target = $region17
    $region16: #{tpu_custom_call.1} parent=1 // pred_region
      %45 = vsyncadd [#allocation8], 0
      %s46 = sshll.u32 %s3, 4
      %s47 = int_to_ptr.hbm [resolvable:$true] %s46
      %s48 = sshll.u32 [#allocation9], 4
      %s49 = int_to_ptr.vmem [resolvable:$true] %s48
      %54 = dma.hbm_to_vmem [thread:$0]  %s47, 3072, %s49, [#allocation8], 128, 128, 8
    $region17: #{tpu_custom_call.1} parent=1 // pred_fallthru
      _
    // Predicated region
    $region18: #{tpu_custom_call.1} parent=1 // pred_check
      _
    $region19: #{tpu_custom_call.1} parent=1 // pred_check_branch
      %56 = sbr.rel (0) target = $region21
    $region20: #{tpu_custom_call.1} parent=1 // pred_region
      _
    $region21: #{tpu_custom_call.1} parent=1 // pred_fallthru
      _
    // Predicated region
    $region22: #{tpu_custom_call.1} parent=1 // pred_check
      _
    $region23: #{tpu_custom_call.1} parent=1 // pred_check_branch
      %58 = sbr.rel (0) target = $region25
    $region24: #{tpu_custom_call.1} parent=1 // pred_region
      _
    $region25: #{tpu_custom_call.1} parent=1 // pred_fallthru
      _
    // Predicated region
    $region26: #{tpu_custom_call.1} parent=1 // pred_check
      _
    $region27: #{tpu_custom_call.1} parent=1 // pred_check_branch
      %60 = sbr.rel (0) target = $region29
    $region28: #{tpu_custom_call.1} parent=1 // pred_region
      %62 = vsyncadd [#allocation11], 0
      %s63 = sshll.u32 %s6, 4
      %s64 = int_to_ptr.hbm [resolvable:$true] %s63
      %s65 = sshll.u32 [#allocation10], 4
      %s66 = int_to_ptr.vmem [resolvable:$true] %s65
      %71 = dma.hbm_to_vmem [thread:$0]  %s64, 3072, %s66, [#allocation11], 64, 64, 4
    $region29: #{tpu_custom_call.1} parent=1 // pred_fallthru
      _
    // Predicated region
    $region30: #{tpu_custom_call.1} parent=1 // pred_check
      _
    $region31: #{tpu_custom_call.1} parent=1 // pred_check_branch
      %73 = sbr.rel (0) target = $region33
    $region32: #{tpu_custom_call.1} parent=1 // pred_region
      %75 = dma.done [#allocation5], 512
    $region33: #{tpu_custom_call.1} parent=1 // pred_fallthru
      _
    // Predicated region
    $region34: #{tpu_custom_call.1} parent=1 // pred_check
      _
    $region35: #{tpu_custom_call.1} parent=1 // pred_check_branch
      %77 = sbr.rel (0) target = $region37
    $region36: #{tpu_custom_call.1} parent=1 // pred_region
      %79 = dma.done [#allocation8], 16
    $region37: #{tpu_custom_call.1} parent=1 // pred_fallthru
      _
    // Predicated region
    $region38: #{tpu_custom_call.1} parent=1 // pred_check
      _
    $region39: #{tpu_custom_call.1} parent=1 // pred_check_branch
      %81 = sbr.rel (0) target = $region41
    $region40: #{tpu_custom_call.1} parent=1 // pred_region
      %83 = dma.done [#allocation8], 3072
    $region41: #{tpu_custom_call.1} parent=1 // pred_fallthru
      _
    // Predicated region
    $region42: #{tpu_custom_call.1} parent=1 // pred_check
      _
    $region43: #{tpu_custom_call.1} parent=1 // pred_check_branch
      %85 = sbr.rel (0) target = $region45
    $region44: #{tpu_custom_call.1} parent=1 // pred_region
      %87 = dma.done [#allocation11], 3072
    $region45: #{tpu_custom_call.1} parent=1 // pred_fallthru
      _
    %vm89 = vcmask 523264
    %90 = vst.msk [vmem:[#allocation2] sm:$0xff] %vm89, 0.0
    %91 = vst.msk [vmem:[#allocation2 + $0x20] sm:$0xff] %vm89, 0.0
    %92 = vst.msk [vmem:[#allocation2 + $0x18] sm:$0xff] %vm89, 0.0
    %93 = vst.msk [vmem:[#allocation2 + $0x38] sm:$0xff] %vm89, 0.0
    %94 = vst [vmem:[#allocation3] sm:$0xff] 0.0
    %95 = vst [vmem:[#allocation3 + $0x20] sm:$0xff] 0.0
    %96 = vst [vmem:[#allocation3 + $0x18] sm:$0xff] 0.0
    %97 = vst [vmem:[#allocation3 + $0x38] sm:$0xff] 0.0
    %v98 = vld [vmem:[#allocation4] sm:$0xff]
    %v99 = vld [vmem:[#allocation4 + $0x8] sm:$0xff]
    %v100 = vld [vmem:[#allocation4 + $0x10] sm:$0xff]
    %v101 = vld [vmem:[#allocation4 + $0x18] sm:$0xff]
    %v102 = vld [vmem:[#allocation7] sm:$0x1]
    %v104 = vperm.slane %v102, 0
    %v106 = vmul.f32 %v98, %v104
    %v107 = vmul.f32 %v99, %v104
    %v108 = vmul.f32 %v100, %v104
    %v109 = vmul.f32 %v101, %v104
    %v110 = vld [vmem:[%s2] sm:$0x1]
    %v112 = vperm.slane %v110, 0
    %v114 = vadd.f32 %v106, %v112
    %v115 = vadd.f32 %v107, %v112
    %v116 = vadd.f32 %v108, %v112
    %v117 = vadd.f32 %v109, %v112
    %v118 = vmax.f32 %v114, 0.0
    %v119 = vmax.f32 %v115, 0.0
    %v120 = vmax.f32 %v116, 0.0
    %v121 = vmax.f32 %v117, 0.0
    %122 = vst.msk [vmem:[#allocation2 + $0x8] sm:$0xff] %vm89, %v118
    %123 = vst.msk [vmem:[#allocation2 + $0x10] sm:$0xff] %vm89, %v119
    %124 = vst.msk [vmem:[#allocation2 + $0x28] sm:$0xff] %vm89, %v120
    %125 = vst.msk [vmem:[#allocation2 + $0x30] sm:$0xff] %vm89, %v121
    %v126 = vld [vmem:[#allocation2 + $0x7] sm:$0xff]
    %v127 = vld [vmem:[#allocation2 + $0xf] sm:$0xff]
    %v128 = vld [vmem:[#allocation2 + $0x27] sm:$0xff]
    %v129 = vld [vmem:[#allocation2 + $0x2f] sm:$0xff]
    %v130 = vpack.c.bf16 %v127, %v126
    %v131 = vpack.c.bf16 %v129, %v128
    %v132 = vld [vmem:[#allocation9] sm:$0xff]
    %v133 = vld [vmem:[#allocation9 + $0x8] sm:$0xff]
    %v134 = vld [vmem:[#allocation9 + $0x10] sm:$0xff]
    %v135 = vld [vmem:[#allocation9 + $0x18] sm:$0xff]
    %v136 = vld [vmem:[#allocation9 + $0x20] sm:$0xff]
    %v137 = vld [vmem:[#allocation9 + $0x28] sm:$0xff]
    %v138 = vld [vmem:[#allocation9 + $0x30] sm:$0xff]
    %v139 = vld [vmem:[#allocation9 + $0x38] sm:$0xff]
    %v140 = vld [vmem:[#allocation2 + $0x8] sm:$0xff]
    %v141 = vld [vmem:[#allocation2 + $0x10] sm:$0xff]
    %v142 = vld [vmem:[#allocation2 + $0x28] sm:$0xff]
    %v143 = vld [vmem:[#allocation2 + $0x30] sm:$0xff]
    %v144 = vpack.c.bf16 %v141, %v140
    %v145 = vpack.c.bf16 %v143, %v142
    %s146 = scalar_lea.vmem [#allocation9], 64
    %v147 = vld [vmem:[%s146] sm:$0xff]
    %v148 = vld [vmem:[%s146 + $0x8] sm:$0xff]
    %v149 = vld [vmem:[%s146 + $0x10] sm:$0xff]
    %v150 = vld [vmem:[%s146 + $0x18] sm:$0xff]
    %v151 = vld [vmem:[%s146 + $0x20] sm:$0xff]
    %v152 = vld [vmem:[%s146 + $0x28] sm:$0xff]
    %v153 = vld [vmem:[%s146 + $0x30] sm:$0xff]
    %v154 = vld [vmem:[%s146 + $0x38] sm:$0xff]
    %v163 = vunpack.c.l.b16 %v147
    %v164 = vunpack.c.h.b16 %v147
    %v165 = vunpack.c.l.b16 %v148
    %v166 = vunpack.c.h.b16 %v148
    %v167 = vunpack.c.l.b16 %v149
    %v168 = vunpack.c.h.b16 %v149
    %v169 = vunpack.c.l.b16 %v150
    %v170 = vunpack.c.h.b16 %v150
    %v171 = vunpack.c.l.b16 %v151
    %v172 = vunpack.c.h.b16 %v151
    %v173 = vunpack.c.l.b16 %v152
    %v174 = vunpack.c.h.b16 %v152
    %v175 = vunpack.c.l.b16 %v153
    %v176 = vunpack.c.h.b16 %v153
    %v177 = vunpack.c.l.b16 %v154
    %v178 = vunpack.c.h.b16 %v154
    %v179 = vpack.c.b16 %v165, %v163
    %v180 = vpack.c.b16 %v166, %v164
    %v181 = vpack.c.b16 %v169, %v167
    %v182 = vpack.c.b16 %v170, %v168
    %v183 = vpack.c.b16 %v173, %v171
    %v184 = vpack.c.b16 %v174, %v172
    %v185 = vpack.c.b16 %v177, %v175
    %v186 = vpack.c.b16 %v178, %v176
    %v196 = vsel %vm89, %v144, 0
    %v199 = vsel %vm89, %v145, 0
    %201 = vmatpush.bf16.msra.mxu0 0
    %202 = vmatpush.bf16.msra.mxu0 0
    %203 = vmatpush.bf16.msra.mxu0 0
    %204 = vmatpush.bf16.msra.mxu0 0
    %205 = vmatpush.bf16.msra.mxu0 %v185
    %206 = vmatpush.bf16.msra.mxu0 %v183
    %207 = vmatpush.bf16.msra.mxu0 %v181
    %208 = vmatpush.bf16.msra.mxu0 %v179
    %209 = vmatmul.bf16.gmra.mxu0 %v196
    %v210 = vpop.f32.mrf.mxu0
    %v211 = vadd.f32 0.0, %v210
    %v212 = vpop.f32.mrf.mxu0
    %v213 = vadd.f32 0.0, %v212
    %214 = vmatmul.bf16.gmra.mxu0 %v199
    %v215 = vpop.f32.mrf.mxu0
    %v216 = vadd.f32 0.0, %v215
    %v217 = vpop.f32.mrf.mxu0
    %v218 = vadd.f32 0.0, %v217
    %219 = vdwg.mxu0
    %220 = vmatpush.bf16.msra.mxu0 0
    %221 = vmatpush.bf16.msra.mxu0 0
    %222 = vmatpush.bf16.msra.mxu0 0
    %223 = vmatpush.bf16.msra.mxu0 0
    %224 = vmatpush.bf16.msra.mxu0 %v186
    %225 = vmatpush.bf16.msra.mxu0 %v184
    %226 = vmatpush.bf16.msra.mxu0 %v182
    %227 = vmatpush.bf16.msra.mxu0 %v180
    %228 = vmatmul.bf16.gmra.mxu0 %v196
    %v229 = vpop.f32.mrf.mxu0
    %v230 = vadd.f32 0.0, %v229
    %v231 = vpop.f32.mrf.mxu0
    %v232 = vadd.f32 0.0, %v231
    %233 = vmatmul.bf16.gmra.mxu0 %v199
    %v234 = vpop.f32.mrf.mxu0
    %v235 = vadd.f32 0.0, %v234
    %v236 = vpop.f32.mrf.mxu0
    %v237 = vadd.f32 0.0, %v236
    %238 = vdwg.mxu0
    %v247 = vunpack.c.l.b16 %v132
    %v248 = vunpack.c.h.b16 %v132
    %v249 = vunpack.c.l.b16 %v133
    %v250 = vunpack.c.h.b16 %v133
    %v251 = vunpack.c.l.b16 %v134
    %v252 = vunpack.c.h.b16 %v134
    %v253 = vunpack.c.l.b16 %v135
    %v254 = vunpack.c.h.b16 %v135
    %v255 = vunpack.c.l.b16 %v136
    %v256 = vunpack.c.h.b16 %v136
    %v257 = vunpack.c.l.b16 %v137
    %v258 = vunpack.c.h.b16 %v137
    %v259 = vunpack.c.l.b16 %v138
    %v260 = vunpack.c.h.b16 %v138
    %v261 = vunpack.c.l.b16 %v139
    %v262 = vunpack.c.h.b16 %v139
    %v263 = vpack.c.b16 %v249, %v247
    %v264 = vpack.c.b16 %v250, %v248
    %v265 = vpack.c.b16 %v253, %v251
    %v266 = vpack.c.b16 %v254, %v252
    %v267 = vpack.c.b16 %v257, %v255
    %v268 = vpack.c.b16 %v258, %v256
    %v269 = vpack.c.b16 %v261, %v259
    %v270 = vpack.c.b16 %v262, %v260
    %v280 = vsel %vm89, %v130, 0
    %v283 = vsel %vm89, %v131, 0
    %285 = vmatpush.bf16.msra.mxu0 0
    %286 = vmatpush.bf16.msra.mxu0 0
    %287 = vmatpush.bf16.msra.mxu0 0
    %288 = vmatpush.bf16.msra.mxu0 0
    %289 = vmatpush.bf16.msra.mxu0 %v269
    %290 = vmatpush.bf16.msra.mxu0 %v267
    %291 = vmatpush.bf16.msra.mxu0 %v265
    %292 = vmatpush.bf16.msra.mxu0 %v263
    %293 = vmatmul.bf16.gmra.mxu0 %v280
    %v294 = vpop.f32.mrf.mxu0
    %v295 = vadd.f32 %v211, %v294
    %v296 = vpop.f32.mrf.mxu0
    %v297 = vadd.f32 %v213, %v296
    %298 = vmatmul.bf16.gmra.mxu0 %v283
    %v299 = vpop.f32.mrf.mxu0
    %v300 = vadd.f32 %v216, %v299
    %v301 = vpop.f32.mrf.mxu0
    %v302 = vadd.f32 %v218, %v301
    %303 = vdwg.mxu0
    %304 = vmatpush.bf16.msra.mxu0 0
    %305 = vmatpush.bf16.msra.mxu0 0
    %306 = vmatpush.bf16.msra.mxu0 0
    %307 = vmatpush.bf16.msra.mxu0 0
    %308 = vmatpush.bf16.msra.mxu0 %v270
    %309 = vmatpush.bf16.msra.mxu0 %v268
    %310 = vmatpush.bf16.msra.mxu0 %v266
    %311 = vmatpush.bf16.msra.mxu0 %v264
    %312 = vmatmul.bf16.gmra.mxu0 %v280
    %v313 = vpop.f32.mrf.mxu0
    %v314 = vadd.f32 %v230, %v313
    %v315 = vpop.f32.mrf.mxu0
    %v316 = vadd.f32 %v232, %v315
    %317 = vmatmul.bf16.gmra.mxu0 %v283
    %v318 = vpop.f32.mrf.mxu0
    %v319 = vadd.f32 %v235, %v318
    %v320 = vpop.f32.mrf.mxu0
    %v321 = vadd.f32 %v237, %v320
    %322 = vdwg.mxu0
    %v323 = vld [vmem:[#allocation2 + $0x9] sm:$0xff]
    %v324 = vld [vmem:[#allocation2 + $0x11] sm:$0xff]
    %v325 = vld [vmem:[#allocation2 + $0x29] sm:$0xff]
    %v326 = vld [vmem:[#allocation2 + $0x31] sm:$0xff]
    %v327 = vpack.c.bf16 %v324, %v323
    %v328 = vpack.c.bf16 %v326, %v325
    %s329 = scalar_lea.vmem [#allocation9], 128
    %v330 = vld [vmem:[%s329] sm:$0xff]
    %v331 = vld [vmem:[%s329 + $0x8] sm:$0xff]
    %v332 = vld [vmem:[%s329 + $0x10] sm:$0xff]
    %v333 = vld [vmem:[%s329 + $0x18] sm:$0xff]
    %v334 = vld [vmem:[%s329 + $0x20] sm:$0xff]
    %v335 = vld [vmem:[%s329 + $0x28] sm:$0xff]
    %v336 = vld [vmem:[%s329 + $0x30] sm:$0xff]
    %v337 = vld [vmem:[%s329 + $0x38] sm:$0xff]
    %v346 = vunpack.c.l.b16 %v330
    %v347 = vunpack.c.h.b16 %v330
    %v348 = vunpack.c.l.b16 %v331
    %v349 = vunpack.c.h.b16 %v331
    %v350 = vunpack.c.l.b16 %v332
    %v351 = vunpack.c.h.b16 %v332
    %v352 = vunpack.c.l.b16 %v333
    %v353 = vunpack.c.h.b16 %v333
    %v354 = vunpack.c.l.b16 %v334
    %v355 = vunpack.c.h.b16 %v334
    %v356 = vunpack.c.l.b16 %v335
    %v357 = vunpack.c.h.b16 %v335
    %v358 = vunpack.c.l.b16 %v336
    %v359 = vunpack.c.h.b16 %v336
    %v360 = vunpack.c.l.b16 %v337
    %v361 = vunpack.c.h.b16 %v337
    %v362 = vpack.c.b16 %v348, %v346
    %v363 = vpack.c.b16 %v349, %v347
    %v364 = vpack.c.b16 %v352, %v350
    %v365 = vpack.c.b16 %v353, %v351
    %v366 = vpack.c.b16 %v356, %v354
    %v367 = vpack.c.b16 %v357, %v355
    %v368 = vpack.c.b16 %v360, %v358
    %v369 = vpack.c.b16 %v361, %v359
    %v379 = vsel %vm89, %v327, 0
    %v382 = vsel %vm89, %v328, 0
    %384 = vmatpush.bf16.msra.mxu0 0
    %385 = vmatpush.bf16.msra.mxu0 0
    %386 = vmatpush.bf16.msra.mxu0 0
    %387 = vmatpush.bf16.msra.mxu0 0
    %388 = vmatpush.bf16.msra.mxu0 %v368
    %389 = vmatpush.bf16.msra.mxu0 %v366
    %390 = vmatpush.bf16.msra.mxu0 %v364
    %391 = vmatpush.bf16.msra.mxu0 %v362
    %392 = vmatmul.bf16.gmra.mxu0 %v379
    %v393 = vpop.f32.mrf.mxu0
    %v394 = vadd.f32 0.0, %v393
    %v395 = vpop.f32.mrf.mxu0
    %v396 = vadd.f32 0.0, %v395
    %397 = vmatmul.bf16.gmra.mxu0 %v382
    %v398 = vpop.f32.mrf.mxu0
    %v399 = vadd.f32 0.0, %v398
    %v400 = vpop.f32.mrf.mxu0
    %v401 = vadd.f32 0.0, %v400
    %402 = vdwg.mxu0
    %403 = vmatpush.bf16.msra.mxu0 0
    %404 = vmatpush.bf16.msra.mxu0 0
    %405 = vmatpush.bf16.msra.mxu0 0
    %406 = vmatpush.bf16.msra.mxu0 0
    %407 = vmatpush.bf16.msra.mxu0 %v369
    %408 = vmatpush.bf16.msra.mxu0 %v367
    %409 = vmatpush.bf16.msra.mxu0 %v365
    %410 = vmatpush.bf16.msra.mxu0 %v363
    %411 = vmatmul.bf16.gmra.mxu0 %v379
    %v412 = vpop.f32.mrf.mxu0
    %v413 = vadd.f32 0.0, %v412
    %v414 = vpop.f32.mrf.mxu0
    %v415 = vadd.f32 0.0, %v414
    %416 = vmatmul.bf16.gmra.mxu0 %v382
    %v417 = vpop.f32.mrf.mxu0
    %v418 = vadd.f32 0.0, %v417
    %v419 = vpop.f32.mrf.mxu0
    %v420 = vadd.f32 0.0, %v419
    %421 = vdwg.mxu0
    %v422 = vadd.f32 %v295, %v394
    %v423 = vadd.f32 %v314, %v413
    %v424 = vadd.f32 %v297, %v396
    %v425 = vadd.f32 %v316, %v415
    %v426 = vadd.f32 %v300, %v399
    %v427 = vadd.f32 %v319, %v418
    %v428 = vadd.f32 %v302, %v401
    %v429 = vadd.f32 %v321, %v420
    %v430 = vld [vmem:[%s4] sm:$0x1]
    %v432 = vperm.slane %v430, 0
    %v434 = vmul.f32 %v422, %v432
    %v435 = vmul.f32 %v424, %v432
    %v436 = vmul.f32 %v426, %v432
    %v437 = vmul.f32 %v428, %v432
    %v438 = vld [vmem:[%s5] sm:$0x1]
    %v440 = vperm.slane %v438, 0
    %v442 = vadd.f32 %v434, %v440
    %v443 = vadd.f32 %v435, %v440
    %v444 = vadd.f32 %v436, %v440
    %v445 = vadd.f32 %v437, %v440
    %v446 = vmax.f32 %v442, 0.0
    %v447 = vmax.f32 %v443, 0.0
    %v448 = vmax.f32 %v444, 0.0
    %v449 = vmax.f32 %v445, 0.0
    %450 = vst [vmem:[#allocation3 + $0x8] sm:$0xff] %v446
    %451 = vst [vmem:[#allocation3 + $0x10] sm:$0xff] %v447
    %452 = vst [vmem:[#allocation3 + $0x28] sm:$0xff] %v448
    %453 = vst [vmem:[#allocation3 + $0x30] sm:$0xff] %v449
    %v454 = vld [vmem:[#allocation3 + $0x7] sm:$0xff]
    %v455 = vld [vmem:[#allocation3 + $0xf] sm:$0xff]
    %v456 = vld [vmem:[#allocation3 + $0x27] sm:$0xff]
    %v457 = vld [vmem:[#allocation3 + $0x2f] sm:$0xff]
    %v458 = vpack.c.bf16 %v455, %v454
    %v459 = vpack.c.bf16 %v457, %v456
    %v460 = vld [vmem:[#allocation10] sm:$0xf]
    %v461 = vld [vmem:[#allocation10 + $0x4] sm:$0xf]
    %v462 = vld [vmem:[#allocation10 + $0x8] sm:$0xf]
    %v463 = vld [vmem:[#allocation10 + $0xc] sm:$0xf]
    %v464 = vld [vmem:[#allocation10 + $0x10] sm:$0xf]
    %v465 = vld [vmem:[#allocation10 + $0x14] sm:$0xf]
    %v466 = vld [vmem:[#allocation10 + $0x18] sm:$0xf]
    %v467 = vld [vmem:[#allocation10 + $0x1c] sm:$0xf]
    %v468 = vld [vmem:[#allocation10 + $0x20] sm:$0xf]
    %v469 = vld [vmem:[#allocation10 + $0x24] sm:$0xf]
    %v470 = vld [vmem:[#allocation10 + $0x28] sm:$0xf]
    %v471 = vld [vmem:[#allocation10 + $0x2c] sm:$0xf]
    %v472 = vld [vmem:[#allocation10 + $0x30] sm:$0xf]
    %v473 = vld [vmem:[#allocation10 + $0x34] sm:$0xf]
    %v474 = vld [vmem:[#allocation10 + $0x38] sm:$0xf]
    %v475 = vld [vmem:[#allocation10 + $0x3c] sm:$0xf]
    %v492 = vunpack.c.l.b16 %v460
    %v493 = vunpack.c.l.b16 %v461
    %v494 = vunpack.c.l.b16 %v462
    %v495 = vunpack.c.l.b16 %v463
    %v496 = vunpack.c.l.b16 %v464
    %v497 = vunpack.c.l.b16 %v465
    %v498 = vunpack.c.l.b16 %v466
    %v499 = vunpack.c.l.b16 %v467
    %v500 = vunpack.c.l.b16 %v468
    %v501 = vunpack.c.l.b16 %v469
    %v502 = vunpack.c.l.b16 %v470
    %v503 = vunpack.c.l.b16 %v471
    %v504 = vunpack.c.l.b16 %v472
    %v505 = vunpack.c.l.b16 %v473
    %v506 = vunpack.c.l.b16 %v474
    %v507 = vunpack.c.l.b16 %v475
    %v508 = vpack.c.b16 %v493, %v492
    %v509 = vpack.c.b16 %v495, %v494
    %v510 = vpack.c.b16 %v497, %v496
    %v511 = vpack.c.b16 %v499, %v498
    %v512 = vpack.c.b16 %v501, %v500
    %v513 = vpack.c.b16 %v503, %v502
    %v514 = vpack.c.b16 %v505, %v504
    %v515 = vpack.c.b16 %v507, %v506
    %524 = vmatpush.bf16.msra.mxu0 %v515
    %525 = vmatpush.bf16.msra.mxu0 %v514
    %526 = vmatpush.bf16.msra.mxu0 %v513
    %527 = vmatpush.bf16.msra.mxu0 %v512
    %528 = vmatpush.bf16.msra.mxu0 %v511
    %529 = vmatpush.bf16.msra.mxu0 %v510
    %530 = vmatpush.bf16.msra.mxu0 %v509
    %531 = vmatpush.bf16.msra.mxu0 %v508
    %532 = vmatmul.bf16.gmra.mxu0 %v458
    %v533 = vpop.f32.mrf.mxu0
    %v534 = vadd.f32 0.0, %v533
    %v535 = vpop.f32.mrf.mxu0
    %v536 = vadd.f32 0.0, %v535
    %537 = vmatmul.bf16.gmra.mxu0 %v459
    %v538 = vpop.f32.mrf.mxu0
    %v539 = vadd.f32 0.0, %v538
    %v540 = vpop.f32.mrf.mxu0
    %v541 = vadd.f32 0.0, %v540
    %542 = vdwg.mxu0
    %v543 = vadd.f32 %v423, %v534
    %v544 = vadd.f32 %v425, %v536
    %v545 = vadd.f32 %v427, %v539
    %v546 = vadd.f32 %v429, %v541
    %v547 = vld [vmem:[#allocation3 + $0x8] sm:$0xff]
    %v548 = vld [vmem:[#allocation3 + $0x10] sm:$0xff]
    %v549 = vld [vmem:[#allocation3 + $0x28] sm:$0xff]
    %v550 = vld [vmem:[#allocation3 + $0x30] sm:$0xff]
    %v551 = vpack.c.bf16 %v548, %v547
    %v552 = vpack.c.bf16 %v550, %v549
    %s553 = scalar_lea.vmem [#allocation10], 64
    %v554 = vld [vmem:[%s553] sm:$0xf]
    %v555 = vld [vmem:[%s553 + $0x4] sm:$0xf]
    %v556 = vld [vmem:[%s553 + $0x8] sm:$0xf]
    %v557 = vld [vmem:[%s553 + $0xc] sm:$0xf]
    %v558 = vld [vmem:[%s553 + $0x10] sm:$0xf]
    %v559 = vld [vmem:[%s553 + $0x14] sm:$0xf]
    %v560 = vld [vmem:[%s553 + $0x18] sm:$0xf]
    %v561 = vld [vmem:[%s553 + $0x1c] sm:$0xf]
    %v562 = vld [vmem:[%s553 + $0x20] sm:$0xf]
    %v563 = vld [vmem:[%s553 + $0x24] sm:$0xf]
    %v564 = vld [vmem:[%s553 + $0x28] sm:$0xf]
    %v565 = vld [vmem:[%s553 + $0x2c] sm:$0xf]
    %v566 = vld [vmem:[%s553 + $0x30] sm:$0xf]
    %v567 = vld [vmem:[%s553 + $0x34] sm:$0xf]
    %v568 = vld [vmem:[%s553 + $0x38] sm:$0xf]
    %v569 = vld [vmem:[%s553 + $0x3c] sm:$0xf]
    %v586 = vunpack.c.l.b16 %v554
    %v587 = vunpack.c.l.b16 %v555
    %v588 = vunpack.c.l.b16 %v556
    %v589 = vunpack.c.l.b16 %v557
    %v590 = vunpack.c.l.b16 %v558
    %v591 = vunpack.c.l.b16 %v559
    %v592 = vunpack.c.l.b16 %v560
    %v593 = vunpack.c.l.b16 %v561
    %v594 = vunpack.c.l.b16 %v562
    %v595 = vunpack.c.l.b16 %v563
    %v596 = vunpack.c.l.b16 %v564
    %v597 = vunpack.c.l.b16 %v565
    %v598 = vunpack.c.l.b16 %v566
    %v599 = vunpack.c.l.b16 %v567
    %v600 = vunpack.c.l.b16 %v568
    %v601 = vunpack.c.l.b16 %v569
    %v602 = vpack.c.b16 %v587, %v586
    %v603 = vpack.c.b16 %v589, %v588
    %v604 = vpack.c.b16 %v591, %v590
    %v605 = vpack.c.b16 %v593, %v592
    %v606 = vpack.c.b16 %v595, %v594
    %v607 = vpack.c.b16 %v597, %v596
    %v608 = vpack.c.b16 %v599, %v598
    %v609 = vpack.c.b16 %v601, %v600
    %618 = vmatpush.bf16.msra.mxu0 %v609
    %619 = vmatpush.bf16.msra.mxu0 %v608
    %620 = vmatpush.bf16.msra.mxu0 %v607
    %621 = vmatpush.bf16.msra.mxu0 %v606
    %622 = vmatpush.bf16.msra.mxu0 %v605
    %623 = vmatpush.bf16.msra.mxu0 %v604
    %624 = vmatpush.bf16.msra.mxu0 %v603
    %625 = vmatpush.bf16.msra.mxu0 %v602
    %626 = vmatmul.bf16.gmra.mxu0 %v551
    %v627 = vpop.f32.mrf.mxu0
    %v628 = vadd.f32 0.0, %v627
    %v629 = vpop.f32.mrf.mxu0
    %v630 = vadd.f32 0.0, %v629
    %631 = vmatmul.bf16.gmra.mxu0 %v552
    %v632 = vpop.f32.mrf.mxu0
    %v633 = vadd.f32 0.0, %v632
    %v634 = vpop.f32.mrf.mxu0
    %v635 = vadd.f32 0.0, %v634
    %636 = vdwg.mxu0
    %v637 = vadd.f32 %v543, %v628
    %v638 = vadd.f32 %v544, %v630
    %v639 = vadd.f32 %v545, %v633
    %v640 = vadd.f32 %v546, %v635
    %v641 = vld [vmem:[#allocation3 + $0x9] sm:$0xff]
    %v642 = vld [vmem:[#allocation3 + $0x11] sm:$0xff]
    %v643 = vld [vmem:[#allocation3 + $0x29] sm:$0xff]
    %v644 = vld [vmem:[#allocation3 + $0x31] sm:$0xff]
    %v645 = vpack.c.bf16 %v642, %v641
    %v646 = vpack.c.bf16 %v644, %v643
    %s647 = scalar_lea.vmem [#allocation10], 128
    %v648 = vld [vmem:[%s647] sm:$0xf]
    %v649 = vld [vmem:[%s647 + $0x4] sm:$0xf]
    %v650 = vld [vmem:[%s647 + $0x8] sm:$0xf]
    %v651 = vld [vmem:[%s647 + $0xc] sm:$0xf]
    %v652 = vld [vmem:[%s647 + $0x10] sm:$0xf]
    %v653 = vld [vmem:[%s647 + $0x14] sm:$0xf]
    %v654 = vld [vmem:[%s647 + $0x18] sm:$0xf]
    %v655 = vld [vmem:[%s647 + $0x1c] sm:$0xf]
    %v656 = vld [vmem:[%s647 + $0x20] sm:$0xf]
    %v657 = vld [vmem:[%s647 + $0x24] sm:$0xf]
    %v658 = vld [vmem:[%s647 + $0x28] sm:$0xf]
    %v659 = vld [vmem:[%s647 + $0x2c] sm:$0xf]
    %v660 = vld [vmem:[%s647 + $0x30] sm:$0xf]
    %v661 = vld [vmem:[%s647 + $0x34] sm:$0xf]
    %v662 = vld [vmem:[%s647 + $0x38] sm:$0xf]
    %v663 = vld [vmem:[%s647 + $0x3c] sm:$0xf]
    %v680 = vunpack.c.l.b16 %v648
    %v681 = vunpack.c.l.b16 %v649
    %v682 = vunpack.c.l.b16 %v650
    %v683 = vunpack.c.l.b16 %v651
    %v684 = vunpack.c.l.b16 %v652
    %v685 = vunpack.c.l.b16 %v653
    %v686 = vunpack.c.l.b16 %v654
    %v687 = vunpack.c.l.b16 %v655
    %v688 = vunpack.c.l.b16 %v656
    %v689 = vunpack.c.l.b16 %v657
    %v690 = vunpack.c.l.b16 %v658
    %v691 = vunpack.c.l.b16 %v659
    %v692 = vunpack.c.l.b16 %v660
    %v693 = vunpack.c.l.b16 %v661
    %v694 = vunpack.c.l.b16 %v662
    %v695 = vunpack.c.l.b16 %v663
    %v696 = vpack.c.b16 %v681, %v680
    %v697 = vpack.c.b16 %v683, %v682
    %v698 = vpack.c.b16 %v685, %v684
    %v699 = vpack.c.b16 %v687, %v686
    %v700 = vpack.c.b16 %v689, %v688
    %v701 = vpack.c.b16 %v691, %v690
    %v702 = vpack.c.b16 %v693, %v692
    %v703 = vpack.c.b16 %v695, %v694
    %712 = vmatpush.bf16.msra.mxu0 %v703
    %713 = vmatpush.bf16.msra.mxu0 %v702
    %714 = vmatpush.bf16.msra.mxu0 %v701
    %715 = vmatpush.bf16.msra.mxu0 %v700
    %716 = vmatpush.bf16.msra.mxu0 %v699
    %717 = vmatpush.bf16.msra.mxu0 %v698
    %718 = vmatpush.bf16.msra.mxu0 %v697
    %719 = vmatpush.bf16.msra.mxu0 %v696
    %720 = vmatmul.bf16.gmra.mxu0 %v645
    %v721 = vpop.f32.mrf.mxu0
    %v722 = vadd.f32 0.0, %v721
    %v723 = vpop.f32.mrf.mxu0
    %v724 = vadd.f32 0.0, %v723
    %725 = vmatmul.bf16.gmra.mxu0 %v646
    %v726 = vpop.f32.mrf.mxu0
    %v727 = vadd.f32 0.0, %v726
    %v728 = vpop.f32.mrf.mxu0
    %v729 = vadd.f32 0.0, %v728
    %730 = vdwg.mxu0
    %v731 = vadd.f32 %v637, %v722
    %v732 = vadd.f32 %v638, %v724
    %v733 = vadd.f32 %v639, %v727
    %v734 = vadd.f32 %v640, %v729
    %735 = vst [vmem:[#allocation12] sm:$0xff] %v731
    %736 = vst [vmem:[#allocation12 + $0x8] sm:$0xff] %v732
    %737 = vst [vmem:[#allocation12 + $0x10] sm:$0xff] %v733
    %738 = vst [vmem:[#allocation12 + $0x18] sm:$0xff] %v734
    // Predicated region
    $region46: #{tpu_custom_call.1} parent=1 // pred_check
      _
    $region47: #{tpu_custom_call.1} parent=1 // pred_check_branch
      %740 = sbr.rel (0) target = $region49
    $region48: #{tpu_custom_call.1} parent=1 // pred_region
      %742 = vsyncadd [#allocation6], 0
      %s743 = sshll.u32 [#allocation12], 4
      %s744 = int_to_ptr.vmem [resolvable:$true] %s743
      %s745 = sshll.u32 %s7, 4
      %s746 = int_to_ptr.hbm [resolvable:$true] %s745
      %751 = dma.vmem_to_hbm [thread:$0]  %s744, 512, %s746, [#allocation6], 128, 128, 8
    $region49: #{tpu_custom_call.1} parent=1 // pred_fallthru
      _
    // Predicated region
    $region50: #{tpu_custom_call.1} parent=1 // pred_check
      _
    $region51: #{tpu_custom_call.1} parent=1 // pred_check_branch
      %753 = sbr.rel (0) target = $region53
    $region52: #{tpu_custom_call.1} parent=1 // pred_region
      %755 = dma.done [#allocation6], 512
    $region53: #{tpu_custom_call.1} parent=1 // pred_fallthru
      _
    %756 = vsyncpa [#allocation5], 1
    %757 = vsyncpa [#allocation8], 1
    %758 = vsyncpa [#allocation11], 1
    %759 = vsyncpa [#allocation6], 1

</llo_original>
